<compile_context>
chip_gen: v7x
topology: tpu7x:2x2x1
jax: 0.10.0
libtpu: 0.0.40
codegen_flags: <defaults>
</compile_context>

<pallas_src>
import math

import jax
import jax.numpy as jnp
from jax.experimental import pallas as pl
from jax.experimental.pallas import tpu as pltpu


def _round_down(x, m):
    return (x // m) * m


def _largest_divisor_leq(n, cap):
    cap = max(1, min(n, cap))
    for d in range(cap, 0, -1):
        if n % d == 0:
            return d
    return 1


def _make_attention_kernel(hw_total, t_hw):
    """Builds the fused pool -> conv1 -> relu -> conv2 -> softmax kernel."""
    ragged = (hw_total % t_hw) != 0

    def kernel(x_ref, w1_ref, w2_ref, o_ref, acc_ref):
        # Grid = (batch_tiles, hw_tiles); hw (reduction) axis is last / "arbitrary".
        #   x_ref  : (TB, C, T_HW)   current spatial tile
        #   w1_ref : (C, hidden)     conv1 weight, pre-scaled by 1/(H*W)
        #   w2_ref : (hidden, K)     conv2 weight, pre-scaled by 1/temperature
        #   o_ref  : (TB, 1, K)      softmax output (written on last hw step)
        #   acc_ref: (TB, C) f32     running spatial sum (VMEM scratch)
        k = pl.program_id(1)

        @pl.when(k == 0)
        def _init():
            acc_ref[...] = jnp.zeros_like(acc_ref)

        xt = x_ref[...]
        if ragged:
            # Last hw tile extends past H*W; zero the out-of-bounds lanes so the
            # stale buffer contents never reach the sum.
            valid = jnp.minimum(hw_total - k * t_hw, t_hw)
            lane = jax.lax.broadcasted_iota(jnp.int32, xt.shape, xt.ndim - 1)
            xt = jnp.where(lane < valid, xt, jnp.zeros_like(xt))

        # Lane-axis partial sum (XLU), accumulated in f32.
        acc_ref[...] += jnp.sum(xt, axis=-1, dtype=jnp.float32)

        @pl.when(k == pl.num_programs(1) - 1)
        def _finalize():
            pooled = acc_ref[...]                               # (TB, C); mean's 1/(H*W) folded into w1
            h = jnp.dot(pooled, w1_ref[...],
                        preferred_element_type=jnp.float32)     # (TB, hidden)
            h = jnp.maximum(h, 0.0)
            att = jnp.dot(h, w2_ref[...],
                          preferred_element_type=jnp.float32)   # (TB, K); 1/temperature folded into w2
            att = att - jnp.max(att, axis=-1, keepdims=True)
            e = jnp.exp(att)
            res = e / jnp.sum(e, axis=-1, keepdims=True)        # exact divide (once per tile)
            o_ref[...] = res[:, None, :].astype(o_ref.dtype)

    return kernel


def attention_forward(x, w1, w2, temperature, *, block_budget_bytes=12 << 20):
    """x: (B, C, H, W), w1: (hidden, C, 1, 1), w2: (K, hidden, 1, 1)."""
    B, C, H, W = x.shape
    hidden = w1.shape[0]
    K = w2.shape[0]
    HW = H * W
    itemsize = jnp.dtype(x.dtype).itemsize

    # Fold constants into the tiny weights (free at trace time).
    w1_t = (w1.reshape(hidden, C).T / float(HW)).astype(jnp.float32)             # (C, hidden)
    w2_t = (w2.reshape(K, hidden).T / float(temperature)).astype(jnp.float32)    # (hidden, K)

    # Contiguous reshape only — no pad, no extra HBM copy of x.
    x_flat = x.reshape(B, C, HW)

    # Batch tiling: keep >= 2 parallel iterations when B >= 2 (megacore / v7x's
    # second TC) and bound tile_b so block size stays predictable for large B.
    tile_b = _largest_divisor_leq(B, min(8, max(1, B // 2)))
    grid_b = B // tile_b
    # TODO(synk): for B == 1 on v7x, a parallel split of the HW axis (two partial
    # sums combined in an epilogue) would be needed to use the second TensorCore.

    # Spatial tiling: biggest lane tile keeping one double-buffered x block within
    # the budget (sized for v7x's 64 MiB VMEM). If the whole H*W row fits, take
    # the full extent so each block is one long contiguous HBM transfer.
    row_bytes = tile_b * C * itemsize
    t_hw_max = max(128, _round_down(block_budget_bytes // row_bytes, 128))
    t_hw = HW if HW <= t_hw_max else t_hw_max
    grid_hw = pl.cdiv(HW, t_hw)

    block_bytes = tile_b * C * t_hw * itemsize
    vmem_limit = int(min(60 << 20, max(32 << 20, 2 * block_bytes + (2 << 20))))

    cost = pl.CostEstimate(
        flops=2 * B * C * HW + 2 * B * C * hidden + 2 * B * hidden * K,
        transcendentals=B * K,
        bytes_accessed=B * C * HW * itemsize
        + (w1_t.size + w2_t.size) * 4
        + B * K * itemsize,
    )

    kernel = _make_attention_kernel(HW, t_hw)

    out = pl.pallas_call(
        kernel,
        out_shape=jax.ShapeDtypeStruct((B, 1, K), x.dtype),
        grid_spec=pltpu.PrefetchScalarGridSpec(
            num_scalar_prefetch=0,
            grid=(grid_b, grid_hw),
            in_specs=[
                pl.BlockSpec((tile_b, C, t_hw), lambda b, k: (b, 0, k)),
                pl.BlockSpec((C, hidden), lambda b, k: (0, 0)),
                pl.BlockSpec((hidden, K), lambda b, k: (0, 0)),
            ],
            out_specs=pl.BlockSpec((tile_b, 1, K), lambda b, k: (b, 0, 0)),
            scratch_shapes=[pltpu.VMEM((tile_b, C), jnp.float32)],
        ),
        compiler_params=pltpu.CompilerParams(
            dimension_semantics=("parallel", "arbitrary"),
            vmem_limit_bytes=vmem_limit,
        ),
        cost_estimate=cost,
    )(x_flat, w1_t, w2_t)

    return out.reshape(B, K)


def _reference(x, w1, w2, temperature):
    hidden, K = w1.shape[0], w2.shape[0]
    pooled = jnp.mean(x, axis=(2, 3))                          # (B, C)
    h = jnp.maximum(pooled @ w1.reshape(hidden, -1).T, 0.0)    # (B, hidden)
    att = h @ w2.reshape(K, -1).T                              # (B, K)
    return jax.nn.softmax(att / temperature, axis=-1)


if __name__ == "__main__":
    # Module config: Attention(in_planes=8, ratio=2, K=4, temprature=30)
    in_planes, ratio, K, temperature = 8, 2, 4, 30
    hidden = in_planes // ratio
    B, H, W = 2, 32, 32   # grid_b = 2 (parallel axis), full-HW contiguous tile

    key = jax.random.PRNGKey(0)
    kx, k1, k2 = jax.random.split(key, 3)

    x = jax.random.normal(kx, (B, in_planes, H, W), dtype=jnp.float32)

    # kaiming_normal_(mode='fan_out', nonlinearity='relu') for a 1x1 conv:
    # std = sqrt(2 / fan_out), fan_out = out_channels
    w1 = jax.random.normal(k1, (hidden, in_planes, 1, 1), dtype=jnp.float32) \
         * math.sqrt(2.0 / hidden)
    w2 = jax.random.normal(k2, (K, hidden, 1, 1), dtype=jnp.float32) \
         * math.sqrt(2.0 / K)

    out = attention_forward(x, w1, w2, temperature)
    out = jax.block_until_ready(out)

    ref = _reference(x, w1, w2, temperature)
    assert out.shape == (B, K)
    assert jnp.allclose(out, ref, atol=1e-3, rtol=1e-3), "mismatch vs reference"

    print("KERNEL_OK")
</pallas_src>

<mosaic_0001>
module attributes {stable_mosaic.version = 11 : i64} {
  func.func @kernel(%arg0: i32, %arg1: i32, %arg2: memref<1x8x1024xf32, #tpu.memory_space<vmem>>, %arg3: memref<8x4xf32, #tpu.memory_space<vmem>>, %arg4: memref<4x4xf32, #tpu.memory_space<vmem>>, %arg5: memref<1x1x4xf32, #tpu.memory_space<vmem>>, %arg6: memref<1x8xf32, #tpu.memory_space<vmem>>) attributes {dimension_semantics = [#tpu.dimension_semantics<parallel>, #tpu.dimension_semantics<arbitrary>], iteration_bounds = array<i64: 2, 1>, scalar_prefetch = 0 : i64, scratch_operands = 1 : i64, tpu.core_type = #tpu.core_type<tc>, window_params = [{transform_indices = @transform_0, window_bounds = array<i64: 1, 8, 1024>}, {pipeline_mode = #tpu.pipeline_mode<synchronous>, transform_indices = @transform_1, window_bounds = array<i64: 8, 4>}, {pipeline_mode = #tpu.pipeline_mode<synchronous>, transform_indices = @transform_2, window_bounds = array<i64: 4, 4>}, {transform_indices = @transform_3, window_bounds = array<i64: 1, 1, 4>}]} {
    %c0_i32 = arith.constant 0 : i32
    %0 = arith.cmpi eq, %arg1, %c0_i32 : i32
    %1 = arith.extui %0 : i1 to i32
    %c0_i32_0 = arith.constant 0 : i32
    %2 = arith.cmpi ne, %1, %c0_i32_0 : i32
    scf.if %2 {
      %cst_9 = arith.constant 0.000000e+00 : f32
      %11 = vector.broadcast %cst_9 : f32 to vector<1x8xf32>
      %c0_10 = arith.constant 0 : index
      %c0_11 = arith.constant 0 : index
      %12 = vector.load %arg6[%c0_10, %c0_11] : memref<1x8xf32, #tpu.memory_space<vmem>>, vector<1x8xf32>
      tpu.vector_store %arg6[%c0_10, %c0_11], %11 {strides = array<i32>} : memref<1x8xf32, #tpu.memory_space<vmem>>, vector<1x8xf32>,
    } else {
    }
    %c0 = arith.constant 0 : index
    %c0_1 = arith.constant 0 : index
    %c0_2 = arith.constant 0 : index
    %3 = vector.load %arg2[%c0, %c0_1, %c0_2] : memref<1x8x1024xf32, #tpu.memory_space<vmem>>, vector<1x8x1024xf32>
    %c0_3 = arith.constant 0 : index
    %c0_4 = arith.constant 0 : index
    %4 = vector.load %arg6[%c0_3, %c0_4] : memref<1x8xf32, #tpu.memory_space<vmem>>, vector<1x8xf32>
    %cst = arith.constant dense<0.000000e+00> : vector<1x8xf32>
    %5 = vector.multi_reduction <add>, %3, %cst [2] : vector<1x8x1024xf32> to vector<1x8xf32>
    %6 = arith.addf %4, %5 : vector<1x8xf32>
    %c0_5 = arith.constant 0 : index
    %c0_6 = arith.constant 0 : index
    %7 = vector.load %arg6[%c0_5, %c0_6] : memref<1x8xf32, #tpu.memory_space<vmem>>, vector<1x8xf32>
    tpu.vector_store %arg6[%c0_5, %c0_6], %6 {strides = array<i32>} : memref<1x8xf32, #tpu.memory_space<vmem>>, vector<1x8xf32>,
    %c0_i32_7 = arith.constant 0 : i32
    %8 = arith.cmpi eq, %arg1, %c0_i32_7 : i32
    %9 = arith.extui %8 : i1 to i32
    %c0_i32_8 = arith.constant 0 : i32
    %10 = arith.cmpi ne, %9, %c0_i32_8 : i32
    scf.if %10 {
      %c0_9 = arith.constant 0 : index
      %c0_10 = arith.constant 0 : index
      %11 = vector.load %arg6[%c0_9, %c0_10] : memref<1x8xf32, #tpu.memory_space<vmem>>, vector<1x8xf32>
      %c0_11 = arith.constant 0 : index
      %c0_12 = arith.constant 0 : index
      %12 = vector.load %arg3[%c0_11, %c0_12] : memref<8x4xf32, #tpu.memory_space<vmem>>, vector<8x4xf32>
      %cst_13 = arith.constant dense<0.000000e+00> : vector<1x4xf32>
      %13 = tpu.matmul %11, %12, %cst_13 {dimension_numbers = #tpu.dot_dimension_numbers<[1], [0], [0], [1], [0, 0, 1, 1], [], []>} : vector<1x8xf32>, vector<8x4xf32>, vector<1x4xf32> -> vector<1x4xf32>
      %cst_14 = arith.constant 0.000000e+00 : f32
      %14 = vector.broadcast %cst_14 : f32 to vector<1x4xf32>
      %15 = arith.maximumf %13, %14 : vector<1x4xf32>
      %c0_15 = arith.constant 0 : index
      %c0_16 = arith.constant 0 : index
      %16 = vector.load %arg4[%c0_15, %c0_16] : memref<4x4xf32, #tpu.memory_space<vmem>>, vector<4x4xf32>
      %cst_17 = arith.constant dense<0.000000e+00> : vector<1x4xf32>
      %17 = tpu.matmul %15, %16, %cst_17 {dimension_numbers = #tpu.dot_dimension_numbers<[1], [0], [0], [1], [0, 0, 1, 1], [], []>} : vector<1x4xf32>, vector<4x4xf32>, vector<1x4xf32> -> vector<1x4xf32>
      %cst_18 = arith.constant dense<0xFF800000> : vector<1xf32>
      %18 = vector.multi_reduction <maximumf>, %17, %cst_18 [1] : vector<1x4xf32> to vector<1xf32>
      %19 = vector.shape_cast %18 : vector<1xf32> to vector<1x1xf32>
      %20 = vector.broadcast %19 : vector<1x1xf32> to vector<1x4xf32>
      %21 = arith.subf %17, %20 : vector<1x4xf32>
      %22 = math.exp %21 : vector<1x4xf32>
      %cst_19 = arith.constant dense<0.000000e+00> : vector<1xf32>
      %23 = vector.multi_reduction <add>, %22, %cst_19 [1] : vector<1x4xf32> to vector<1xf32>
      %24 = vector.shape_cast %23 : vector<1xf32> to vector<1x1xf32>
      %25 = vector.broadcast %24 : vector<1x1xf32> to vector<1x4xf32>
      %26 = arith.divf %22, %25 : vector<1x4xf32>
      %27 = vector.shape_cast %26 : vector<1x4xf32> to vector<1x1x4xf32>
      %c0_20 = arith.constant 0 : index
      %c0_21 = arith.constant 0 : index
      %c0_22 = arith.constant 0 : index
      %28 = vector.load %arg5[%c0_20, %c0_21, %c0_22] : memref<1x1x4xf32, #tpu.memory_space<vmem>>, vector<1x1x4xf32>
      tpu.vector_store %arg5[%c0_20, %c0_21, %c0_22], %27 {strides = array<i32>} : memref<1x1x4xf32, #tpu.memory_space<vmem>>, vector<1x1x4xf32>,
    } else {
    }
    return
  }
  func.func @transform_0(%arg0: i32, %arg1: i32) -> (i32, i32, i32) {
    %c0_i32 = arith.constant 0 : i32
    %c0_i32_0 = arith.constant 0 : i32
    return %arg0, %c0_i32, %arg1 : i32, i32, i32
  }
  func.func @transform_1(%arg0: i32, %arg1: i32) -> (i32, i32) {
    %c0_i32 = arith.constant 0 : i32
    %c0_i32_0 = arith.constant 0 : i32
    %c0_i32_1 = arith.constant 0 : i32
    return %c0_i32, %c0_i32_0 : i32, i32
  }
  func.func @transform_2(%arg0: i32, %arg1: i32) -> (i32, i32) {
    %c0_i32 = arith.constant 0 : i32
    %c0_i32_0 = arith.constant 0 : i32
    %c0_i32_1 = arith.constant 0 : i32
    return %c0_i32, %c0_i32_0 : i32, i32
  }
  func.func @transform_3(%arg0: i32, %arg1: i32) -> (i32, i32, i32) {
    %c0_i32 = arith.constant 0 : i32
    %c0_i32_0 = arith.constant 0 : i32
    %c0_i32_1 = arith.constant 0 : i32
    return %arg0, %c0_i32, %c0_i32_0 : i32, i32, i32
  }
}

</mosaic_0001>

<llo_original>
// kernel: tpu_custom_call.1
$region0: #{tpu_custom_call.1}
  #allocation0 [shape = 'u32[]', space=smem, size = 0x4, offset = 0x4, fixed_abs, tag = 'smem constant byte address 0x4 - core index']
  #allocation1 [shape = 'u32[144,128]{1,0:T(1,128)}', space=vmem, size = 0x12000, scoped, tag = 'internal scratch']
  #allocation2 [shape = 'f32[1,8]{1,0:T(1,128)}', space=vmem, size = 0x200, scoped, tag = 'scratch operand']
  %s0 = inlined_call_operand.hbm [shape: f32[2,8,1024], index: 0, kind: input, shape index: {}]
  %s1 = inlined_call_operand.vmem [shape: f32[8,4], index: 1, kind: input, shape index: {}]
  %s2 = inlined_call_operand.vmem [shape: f32[4,4], index: 2, kind: input, shape index: {}]
  %s3 = inlined_call_operand.hbm [shape: f32[2,1,4], index: 3, kind: output, shape index: {}]
  %s4 = sld [smem:[#allocation0]]
  $region57: #{tpu_custom_call.1} parent=0
    _
  %s6 = ssub.s32 1, %s4
  %s7 = scalar_select 0, %s6, %s4
  $region1: #{tpu_custom_call.1} parent=0
    #allocation3 [shape = 'u8[65536]{0}', space=vmem, size = 0x10000, scoped, tag = 'input window, operand 0']
    #allocation4 [shape = 's32[2]{0}', space=sflag, size = 0x8, scoped, tag = 'scoped memory for tpu_custom_call.1']
    #allocation5 [shape = 's32[2]{0}', space=sflag, size = 0x8, scoped, tag = 'scoped memory for tpu_custom_call.1']
    #allocation6 [shape = 'u8[1024]{0}', space=vmem, size = 0x400, scoped, tag = 'output window, operand 0']
    %8 = vsyncpa [#allocation4], 0
    %s9 = scalar_lea.sflag [#allocation4], 1
    %10 = vsyncpa %s9, 0
    %11 = vsyncpa [#allocation5], 0
    %s12 = scalar_lea.sflag [#allocation5], 1
    %13 = vsyncpa %s12, 0
    loop: start=0, step=1, limit=4
    $region2: #{tpu_custom_call.1} parent=1 // loop_pre_header
      _
    $region3: #{tpu_custom_call.1} parent=1 // loop_header
      %s15 = sphi 0, %s19
      %p16 = scmp.ge.s32.totalorder %s15, 4
      %s22 = sphi 0, %s34
      %s23 = sphi 0, %s30
      %s24 = sphi 0, %s22
      %s25 = sphi 0, %s23
      %s26 = sphi 0, %s24
      %s27 = sphi 0, %s25
      %s39 = sphi 0, %s41
      %s42 = sphi 0, %s39
      %s43 = sphi 0, %s42
      %s59 = sphi 0, %s43
      %s63 = sphi 0, %s63
      %s65 = sphi 0, %s63
      %s66 = sphi 0, %s65
      %s80 = sphi 0, %s66
      %s84 = sphi 0, %s84
      %s86 = sphi 0, %s84
      %s87 = sphi 0, %s86
      %s101 = sphi 0, %s87
      %s107 = sphi 0, %s109
      %s110 = sphi 0, %s107
      %s111 = sphi 0, %s110
      %s127 = sphi 0, %s111
    $region4: #{tpu_custom_call.1} parent=1 // loop_header_branch
      %18 = sbr.rel (%p16) target = $region8
    $region5: #{tpu_custom_call.1} parent=1 // loop_body
      %s20 = ssub.s32 %s15, 1
      %s21 = ssub.s32 %s15, 2
      %s28 = sadd.s32 1, %s23
      %p29 = scmp.ge.s32.totalorder %s28, 1
      %s30 = scalar_select %p29, 0, %s28
      %s31 = sadd.s32 1, %s22
      %s32 = scalar_select %p29, %s31, %s22
      %p33 = scmp.ge.s32.totalorder %s32, 2
      %s34 = scalar_select %p33, 0, %s32
      %s35 = ssub.s32 %s22, %s34
      %s36 = ssub.s32 %s23, %s30
      %s37 = sor.u32 %s35, %s36
      %p38 = scmp.eq.s32.totalorder %s37, 0
      %s40 = sadd.s32 %s39, 1
      %s41 = scalar_select %p38, %s39, %s40
      %p44 = pneg %p38
      %p45 = scmp.eq.s32.totalorder %s15, 1
      %p46 = por %p44, %p45
      %p47 = scmp.ne.s32.totalorder %s39, %s42
      %p48 = scmp.eq.s32.totalorder %s15, 0
      %p49 = por %p47, %p48
      %p50 = scmp.ne.s32.totalorder %s39, %s42
      %p51 = scmp.eq.s32.totalorder %s20, 1
      %p52 = por %p50, %p51
      %p53 = scmp.ne.s32.totalorder %s42, %s43
      %p54 = scmp.eq.s32.totalorder %s20, 0
      %p55 = por %p53, %p54
      %p56 = scmp.ne.s32.totalorder %s42, %s43
      %p57 = scmp.eq.s32.totalorder %s21, 1
      %p58 = por %p56, %p57
      %p60 = scmp.ne.s32.totalorder %s43, %s59
      %p61 = scmp.eq.s32.totalorder %s21, 0
      %p62 = por %p60, %p61
      %s64 = sadd.s32 %s63, 1
      %p67 = scmp.eq.s32.totalorder %s15, 1
      %p68 = scmp.ne.s32.totalorder %s63, %s65
      %p69 = scmp.eq.s32.totalorder %s15, 0
      %p70 = por %p68, %p69
      %p71 = scmp.ne.s32.totalorder %s63, %s65
      %p72 = scmp.eq.s32.totalorder %s20, 1
      %p73 = por %p71, %p72
      %p74 = scmp.ne.s32.totalorder %s65, %s66
      %p75 = scmp.eq.s32.totalorder %s20, 0
      %p76 = por %p74, %p75
      %p77 = scmp.ne.s32.totalorder %s65, %s66
      %p78 = scmp.eq.s32.totalorder %s21, 1
      %p79 = por %p77, %p78
      %p81 = scmp.ne.s32.totalorder %s66, %s80
      %p82 = scmp.eq.s32.totalorder %s21, 0
      %p83 = por %p81, %p82
      %s85 = sadd.s32 %s84, 1
      %p88 = scmp.eq.s32.totalorder %s15, 1
      %p89 = scmp.ne.s32.totalorder %s84, %s86
      %p90 = scmp.eq.s32.totalorder %s15, 0
      %p91 = por %p89, %p90
      %p92 = scmp.ne.s32.totalorder %s84, %s86
      %p93 = scmp.eq.s32.totalorder %s20, 1
      %p94 = por %p92, %p93
      %p95 = scmp.ne.s32.totalorder %s86, %s87
      %p96 = scmp.eq.s32.totalorder %s20, 0
      %p97 = por %p95, %p96
      %p98 = scmp.ne.s32.totalorder %s86, %s87
      %p99 = scmp.eq.s32.totalorder %s21, 1
      %p100 = por %p98, %p99
      %p102 = scmp.ne.s32.totalorder %s87, %s101
      %p103 = scmp.eq.s32.totalorder %s21, 0
      %p104 = por %p102, %p103
      %s105 = ssub.s32 %s22, %s34
      %p106 = scmp.eq.s32.totalorder %s105, 0
      %s108 = sadd.s32 %s107, 1
      %s109 = scalar_select %p106, %s107, %s108
      %p112 = pneg %p106
      %p113 = scmp.eq.s32.totalorder %s15, 1
      %p114 = por %p112, %p113
      %p115 = scmp.ne.s32.totalorder %s107, %s110
      %p116 = scmp.eq.s32.totalorder %s15, 0
      %p117 = por %p115, %p116
      %p118 = scmp.ne.s32.totalorder %s107, %s110
      %p119 = scmp.eq.s32.totalorder %s20, 1
      %p120 = por %p118, %p119
      %p121 = scmp.ne.s32.totalorder %s110, %s111
      %p122 = scmp.eq.s32.totalorder %s20, 0
      %p123 = por %p121, %p122
      %p124 = scmp.ne.s32.totalorder %s110, %s111
      %p125 = scmp.eq.s32.totalorder %s21, 1
      %p126 = por %p124, %p125
      %p128 = scmp.ne.s32.totalorder %s111, %s127
      %p129 = scmp.eq.s32.totalorder %s21, 0
      %p130 = por %p128, %p129
      %p131 = scmp.le.s32.totalorder 1, %s15
      %p132 = scmp.lt.s32.totalorder %s15, 3
      %p133 = pnand %p131, %p132
      %p134 = pneg %p133
      // Predicated region
      $region9: #{tpu_custom_call.1} parent=5 // pred_check
        _
      $region10: #{tpu_custom_call.1} parent=5 // pred_check_branch
        %136 = sbr.rel (%p133) target = $region12
      $region11: #{tpu_custom_call.1} parent=5 // pred_region
        %s137 = ssub.s32 %s15, 1
        // Predicated region
        $region13: #{tpu_custom_call.1} parent=11 // pred_check
          %p138 = pneg %p76
        $region14: #{tpu_custom_call.1} parent=11 // pred_check_branch
          %140 = sbr.rel (%p138) target = $region16
        $region15: #{tpu_custom_call.1} parent=11 // pred_region
          _
        $region16: #{tpu_custom_call.1} parent=11 // pred_fallthru
          _
        // Predicated region
        $region17: #{tpu_custom_call.1} parent=11 // pred_check
          %p141 = pneg %p97
        $region18: #{tpu_custom_call.1} parent=11 // pred_check_branch
          %143 = sbr.rel (%p141) target = $region20
        $region19: #{tpu_custom_call.1} parent=11 // pred_region
          _
        $region20: #{tpu_custom_call.1} parent=11 // pred_fallthru
          _
      $region12: #{tpu_custom_call.1} parent=5 // pred_fallthru
        _
      %p144 = scmp.lt.s32.totalorder %s15, 2
      // Predicated region
      $region21: #{tpu_custom_call.1} parent=5 // pred_check
        %p145 = pneg %p144
      $region22: #{tpu_custom_call.1} parent=5 // pred_check_branch
        %147 = sbr.rel (%p145) target = $region24
      $region23: #{tpu_custom_call.1} parent=5 // pred_region
        // Predicated region
        $region25: #{tpu_custom_call.1} parent=23 // pred_check
          %p148 = pneg %p49
        $region26: #{tpu_custom_call.1} parent=23 // pred_check_branch
          %150 = sbr.rel (%p148) target = $region28
        $region27: #{tpu_custom_call.1} parent=23 // pred_region
          %s151 = sand.u32 %s39, 1
          %s152 = scalar_lea.sflag [#allocation4], %s151
          %s153 = sand.u32 %s39, 1
          %s154 = smul.addr %s153, 64
          %s155 = scalar_lea.vmem [#allocation3], %s154
          %s156 = smul.u32 8, %s23
          %s158 = ssub.s32 1024, 1024
          %159 = vsyncadd %s152, %s158
          %s160 = smul.addr %s22, 8
          %s161 = sadd.s32 %s156, %s160
          %s162 = smul.addr %s161, 128
          %s163 = scalar_lea.hbm %s0, %s162
          %s165 = sshll.u32 %s155, 4
          %s166 = int_to_ptr.vmem [resolvable:$true] %s165
          %168 = dma.hbm_to_vmem [thread:$0]  %s163, 1024, %s166, %s152
        $region28: #{tpu_custom_call.1} parent=23 // pred_fallthru
          _
      $region24: #{tpu_custom_call.1} parent=5 // pred_fallthru
        _
      %p169 = scmp.le.s32.totalorder 1, %s15
      %p170 = scmp.lt.s32.totalorder %s15, 3
      %p171 = pnand %p169, %p170
      %p172 = pneg %p171
      // Predicated region
      $region29: #{tpu_custom_call.1} parent=5 // pred_check
        _
      $region30: #{tpu_custom_call.1} parent=5 // pred_check_branch
        %174 = sbr.rel (%p171) target = $region32
      $region31: #{tpu_custom_call.1} parent=5 // pred_region
        %s175 = ssub.s32 %s15, 1
        %s176 = sand.u32 %s42, 1
        %s177 = scalar_lea.sflag [#allocation4], %s176
        %s178 = sand.u32 %s42, 1
        %s179 = smul.addr %s178, 64
        %s180 = scalar_lea.vmem [#allocation3], %s179
        // Predicated region
        $region33: #{tpu_custom_call.1} parent=31 // pred_check
          %p181 = pneg %p55
        $region34: #{tpu_custom_call.1} parent=31 // pred_check_branch
          %183 = sbr.rel (%p181) target = $region36
        $region35: #{tpu_custom_call.1} parent=31 // pred_region
          %184 = dma.done %s177, 1024
        $region36: #{tpu_custom_call.1} parent=31 // pred_fallthru
          _
        %s185 = sand.u32 %s42, 1
        %s186 = scalar_lea.sflag [#allocation4], %s185
        %s187 = sand.u32 %s42, 1
        %s188 = smul.addr %s187, 64
        %s189 = scalar_lea.vmem [#allocation3], %s188
        %p190 = pneg %p55
        %p191 = pneg %p52
        %p192 = pneg %p76
        %p193 = pneg %p73
        %p194 = pneg %p97
        %p195 = pneg %p94
        %p196 = pneg %p123
        %p197 = pneg %p120
        %s198 = sand.u32 %s110, 1
        %s199 = scalar_lea.sflag [#allocation5], %s198
        %s200 = sand.u32 %s110, 1
        %s201 = scalar_lea.vmem [#allocation6], %s200
        %s202 = smul.u32 8, %s25
        %p203 = scmp.eq.s32.totalorder %s25, 0
        // Predicated region
        $region37: #{tpu_custom_call.1} parent=31 // pred_check
          %p204 = pneg %p203
        $region38: #{tpu_custom_call.1} parent=31 // pred_check_branch
          %206 = sbr.rel (%p204) target = $region40
        $region39: #{tpu_custom_call.1} parent=31 // pred_region
          %vm207 = vcmask 57344
          %208 = vst.msk [vmem:[#allocation2] sm:$0x1] %vm207, 0.0
        $region40: #{tpu_custom_call.1} parent=31 // pred_fallthru
          _
        %v209 = vld [vmem:[%s180] sm:$0xff]
        %v210 = vld [vmem:[%s180 + $0x8] sm:$0xff]
        %v211 = vld [vmem:[%s180 + $0x10] sm:$0xff]
        %v212 = vld [vmem:[%s180 + $0x18] sm:$0xff]
        %v213 = vld [vmem:[%s180 + $0x20] sm:$0xff]
        %v214 = vld [vmem:[%s180 + $0x28] sm:$0xff]
        %v215 = vld [vmem:[%s180 + $0x30] sm:$0xff]
        %v216 = vld [vmem:[%s180 + $0x38] sm:$0xff]
        %v217 = vld [vmem:[#allocation2] sm:$0x1]
        %v218 = vadd.f32 %v209, %v210
        %v219 = vadd.f32 %v218, %v211
        %v220 = vadd.f32 %v219, %v212
        %v221 = vadd.f32 %v220, %v213
        %v222 = vadd.f32 %v221, %v214
        %v223 = vadd.f32 %v222, %v215
        %v224 = vadd.f32 %v223, %v216
        %225 = vadd.xlane.f32.xlu0 %v224
        %v226 = vpop.xlane.xlu0 %225
        %v228 = vlaneseq
        %v229 = vshrl.u32 %v228, 7
        %v230 = vsub.s32 0, %v229
        %v231 = vrot.slane %v226, %v230
        %v232 = vlaneseq
        %v233 = vshrl.u32 %v232, 7
        %v234 = vsub.s32 1, %v233
        %v235 = vrot.slane %v226, %v234
        %v236 = vlaneseq
        %v237 = vshrl.u32 %v236, 7
        %v238 = vsub.s32 2, %v237
        %v239 = vrot.slane %v226, %v238
        %v240 = vlaneseq
        %v241 = vshrl.u32 %v240, 7
        %v242 = vsub.s32 3, %v241
        %v243 = vrot.slane %v226, %v242
        %v244 = vlaneseq
        %v245 = vshrl.u32 %v244, 7
        %v246 = vsub.s32 4, %v245
        %v247 = vrot.slane %v226, %v246
        %v248 = vlaneseq
        %v249 = vshrl.u32 %v248, 7
        %v250 = vsub.s32 5, %v249
        %v251 = vrot.slane %v226, %v250
        %v252 = vlaneseq
        %v253 = vshrl.u32 %v252, 7
        %v254 = vsub.s32 6, %v253
        %v255 = vrot.slane %v226, %v254
        %v256 = vlaneseq
        %v257 = vshrl.u32 %v256, 7
        %v258 = vsub.s32 7, %v257
        %v259 = vrot.slane %v226, %v258
        %v260 = vcombine.low %v231, %v235
        %v261 = vcombine.low %v239, %v243
        %v262 = vcombine.low %v247, %v251
        %v263 = vcombine.low %v255, %v259
        %v265 = vunpack.c.l.s4 1966171168
        %v266 = vunpack.c.0.s8 %v265
        %v267 = vlaneseq
        %v268 = vshrl.u32 %v267, 7
        %v269 = vsub.s32 %v266, %v268
        %v270 = vrot.slane %v260, %v269
        %v272 = vunpack.c.l.s4 1966171168
        %v273 = vunpack.c.0.s8 %v272
        %v274 = vlaneseq
        %v275 = vshrl.u32 %v274, 7
        %v276 = vsub.s32 %v273, %v275
        %v277 = vrot.slane %v261, %v276
        %v279 = vunpack.c.l.s4 1966171168
        %v280 = vunpack.c.0.s8 %v279
        %v281 = vlaneseq
        %v282 = vshrl.u32 %v281, 7
        %v283 = vsub.s32 %v280, %v282
        %v284 = vrot.slane %v262, %v283
        %v286 = vunpack.c.l.s4 1966171168
        %v287 = vunpack.c.0.s8 %v286
        %v288 = vlaneseq
        %v289 = vshrl.u32 %v288, 7
        %v290 = vsub.s32 %v287, %v289
        %v291 = vrot.slane %v263, %v290
        %v292 = vcombine.low %v270, %v277
        %v293 = vcombine.low %v284, %v291
        %v295 = vunpack.c.l.s4 1966171168
        %v296 = vunpack.c.0.s8 %v295
        %v297 = vlaneseq
        %v298 = vshrl.u32 %v297, 7
        %v299 = vsub.s32 %v296, %v298
        %v300 = vrot.slane %v292, %v299
        %v302 = vunpack.c.l.s4 1966171168
        %v303 = vunpack.c.0.s8 %v302
        %v304 = vlaneseq
        %v305 = vshrl.u32 %v304, 7
        %v306 = vsub.s32 %v303, %v305
        %v307 = vrot.slane %v293, %v306
        %v308 = vcombine.low %v300, %v307
        %309 = vset.pattern.permute.xlu0 0
        %310 = vperm.xlu0 %309, %v308
        %v311 = vpop.permute.xlu0 %310
        %v312 = vlaneseq
        %v313 = vand.u32 %v312, 127
        %v314 = vlaneseq
        %v315 = vshrl.u32 %v314, 7
        %v316 = vsub.s32 %v313, %v315
        %v317 = vrot.slane %v311, %v316
        %v319 = vunpack.c.l.s4 1966171168
        %v320 = vunpack.c.0.s8 %v319
        %v321 = vlaneseq
        %v322 = vshrl.u32 %v321, 7
        %v323 = vsub.s32 %v320, %v322
        %v324 = vrot.slane %v317, %v323
        %v326 = vunpack.c.l.s4 1966171168
        %v327 = vunpack.c.0.s8 %v326
        %v328 = vlaneseq
        %v329 = vshrl.u32 %v328, 7
        %v330 = vsub.s32 %v327, %v329
        %v331 = vrot.slane %v324, %v330
        %v333 = vadd.f32 %v217, %v331
        %vm334 = vcmask 57344
        %335 = vst.msk [vmem:[#allocation2] sm:$0x1] %vm334, %v333
        // Predicated region
        $region41: #{tpu_custom_call.1} parent=31 // pred_check
          %p336 = pneg %p203
        $region42: #{tpu_custom_call.1} parent=31 // pred_check_branch
          %338 = sbr.rel (%p336) target = $region44
        $region43: #{tpu_custom_call.1} parent=31 // pred_region
          %v339 = vld [vmem:[#allocation2] sm:$0x1]
          %v340 = vld [vmem:[%s1] sm:$0xff]
          %vm341 = vcmask 64512
          %v343 = vsel %vm341, %v339, 0
          %345 = vmatprep.subr.mxu0 0.0
          %346 = vmatpush1.msra.mxu0 %v340
          %347 = vmatprep.subr.mxu0 0.0
          %348 = vmatpush1.msra.mxu0 0.0
          %349 = vmatprep.subr.mxu0 0.0
          %350 = vmatpush1.msra.mxu0 0.0
          %351 = vmatprep.subr.mxu0 0.0
          %352 = vmatpush1.msra.mxu0 0.0
          %353 = vmatprep.subr.mxu0 0.0
          %354 = vmatpush1.msra.mxu0 0.0
          %355 = vmatprep.subr.mxu0 0.0
          %356 = vmatpush1.msra.mxu0 0.0
          %357 = vmatprep.subr.mxu0 0.0
          %358 = vmatpush1.msra.mxu0 0.0
          %359 = vmatprep.subr.mxu0 0.0
          %360 = vmatpush1.msra.mxu0 0.0
          %361 = vmatprep.subr.mxu0 0.0
          %362 = vmatpush1.msra.mxu0 0.0
          %363 = vmatprep.subr.mxu0 0.0
          %364 = vmatpush1.msra.mxu0 0.0
          %365 = vmatprep.subr.mxu0 0.0
          %366 = vmatpush1.msra.mxu0 0.0
          %367 = vmatprep.subr.mxu0 0.0
          %368 = vmatpush1.msra.mxu0 0.0
          %369 = vmatprep.subr.mxu0 0.0
          %370 = vmatpush1.msra.mxu0 0.0
          %371 = vmatprep.subr.mxu0 0.0
          %372 = vmatpush1.msra.mxu0 0.0
          %373 = vmatprep.subr.mxu0 0.0
          %374 = vmatpush1.msra.mxu0 0.0
          %375 = vmatprep.subr.mxu0 0.0
          %376 = vmatpush1.msra.mxu0 0.0
          %377 = vmatprep.subr.mxu0 0.0
          %378 = vmatpush1.msra.mxu0 0.0
          %379 = vmatprep.subr.mxu0 0.0
          %380 = vmatpush1.msra.mxu0 0.0
          %381 = vmatprep.subr.mxu0 0.0
          %382 = vmatpush1.msra.mxu0 0.0
          %383 = vmatprep.subr.mxu0 0.0
          %384 = vmatpush1.msra.mxu0 0.0
          %385 = vmatprep.subr.mxu0 0.0
          %386 = vmatpush1.msra.mxu0 0.0
          %387 = vmatprep.subr.mxu0 0.0
          %388 = vmatpush1.msra.mxu0 0.0
          %389 = vmatprep.subr.mxu0 0.0
          %390 = vmatpush1.msra.mxu0 0.0
          %391 = vmatprep.subr.mxu0 0.0
          %392 = vmatpush1.msra.mxu0 0.0
          %393 = vmatprep.subr.mxu0 0.0
          %394 = vmatpush1.msra.mxu0 0.0
          %395 = vmatprep.subr.mxu0 0.0
          %396 = vmatpush1.msra.mxu0 0.0
          %397 = vmatprep.subr.mxu0 0.0
          %398 = vmatpush1.msra.mxu0 0.0
          %399 = vmatprep.subr.mxu0 0.0
          %400 = vmatpush1.msra.mxu0 0.0
          %401 = vmatprep.subr.mxu0 0.0
          %402 = vmatpush1.msra.mxu0 0.0
          %403 = vmatprep.subr.mxu0 0.0
          %404 = vmatpush1.msra.mxu0 0.0
          %405 = vmatprep.subr.mxu0 0.0
          %406 = vmatpush1.msra.mxu0 0.0
          %407 = vmatprep.subr.mxu0 0.0
          %408 = vmatpush1.msra.mxu0 0.0
          %409 = vmatprep.mubr.f32.mxu0 0.0
          %410 = vmatmul.mubr.f32.gmra.mrb[0].mxu0 %v343
          %v411 = vpop.f32.mrb[0].mxu0
          %v412 = vadd.f32 0.0, %v411
          %v413 = vpop.f32.mrb[0].mxu0
          %414 = vdwg.mxu0
          %v415 = vmax.f32 %v412, 0.0
          %v416 = vld [vmem:[%s2] sm:$0xf]
          %vm417 = vcmask 31744
          %v419 = vsel %vm417, %v415, 0
          %vm421 = vcmask 1043456
          %v423 = vsel %vm421, %v416, 0
          %425 = vmatprep.subr.mxu0 0.0
          %426 = vmatpush1.msra.mxu0 %v423
          %427 = vmatprep.subr.mxu0 0.0
          %428 = vmatpush1.msra.mxu0 0.0
          %429 = vmatprep.subr.mxu0 0.0
          %430 = vmatpush1.msra.mxu0 0.0
          %431 = vmatprep.subr.mxu0 0.0
          %432 = vmatpush1.msra.mxu0 0.0
          %433 = vmatprep.subr.mxu0 0.0
          %434 = vmatpush1.msra.mxu0 0.0
          %435 = vmatprep.subr.mxu0 0.0
          %436 = vmatpush1.msra.mxu0 0.0
          %437 = vmatprep.subr.mxu0 0.0
          %438 = vmatpush1.msra.mxu0 0.0
          %439 = vmatprep.subr.mxu0 0.0
          %440 = vmatpush1.msra.mxu0 0.0
          %441 = vmatprep.subr.mxu0 0.0
          %442 = vmatpush1.msra.mxu0 0.0
          %443 = vmatprep.subr.mxu0 0.0
          %444 = vmatpush1.msra.mxu0 0.0
          %445 = vmatprep.subr.mxu0 0.0
          %446 = vmatpush1.msra.mxu0 0.0
          %447 = vmatprep.subr.mxu0 0.0
          %448 = vmatpush1.msra.mxu0 0.0
          %449 = vmatprep.subr.mxu0 0.0
          %450 = vmatpush1.msra.mxu0 0.0
          %451 = vmatprep.subr.mxu0 0.0
          %452 = vmatpush1.msra.mxu0 0.0
          %453 = vmatprep.subr.mxu0 0.0
          %454 = vmatpush1.msra.mxu0 0.0
          %455 = vmatprep.subr.mxu0 0.0
          %456 = vmatpush1.msra.mxu0 0.0
          %457 = vmatprep.subr.mxu0 0.0
          %458 = vmatpush1.msra.mxu0 0.0
          %459 = vmatprep.subr.mxu0 0.0
          %460 = vmatpush1.msra.mxu0 0.0
          %461 = vmatprep.subr.mxu0 0.0
          %462 = vmatpush1.msra.mxu0 0.0
          %463 = vmatprep.subr.mxu0 0.0
          %464 = vmatpush1.msra.mxu0 0.0
          %465 = vmatprep.subr.mxu0 0.0
          %466 = vmatpush1.msra.mxu0 0.0
          %467 = vmatprep.subr.mxu0 0.0
          %468 = vmatpush1.msra.mxu0 0.0
          %469 = vmatprep.subr.mxu0 0.0
          %470 = vmatpush1.msra.mxu0 0.0
          %471 = vmatprep.subr.mxu0 0.0
          %472 = vmatpush1.msra.mxu0 0.0
          %473 = vmatprep.subr.mxu0 0.0
          %474 = vmatpush1.msra.mxu0 0.0
          %475 = vmatprep.subr.mxu0 0.0
          %476 = vmatpush1.msra.mxu0 0.0
          %477 = vmatprep.subr.mxu0 0.0
          %478 = vmatpush1.msra.mxu0 0.0
          %479 = vmatprep.subr.mxu0 0.0
          %480 = vmatpush1.msra.mxu0 0.0
          %481 = vmatprep.subr.mxu0 0.0
          %482 = vmatpush1.msra.mxu0 0.0
          %483 = vmatprep.subr.mxu0 0.0
          %484 = vmatpush1.msra.mxu0 0.0
          %485 = vmatprep.subr.mxu0 0.0
          %486 = vmatpush1.msra.mxu0 0.0
          %487 = vmatprep.subr.mxu0 0.0
          %488 = vmatpush1.msra.mxu0 0.0
          %489 = vmatprep.mubr.f32.mxu0 0.0
          %490 = vmatmul.mubr.f32.gmra.mrb[0].mxu0 %v419
          %v491 = vpop.f32.mrb[0].mxu0
          %v492 = vadd.f32 0.0, %v491
          %v493 = vpop.f32.mrb[0].mxu0
          %494 = vdwg.mxu0
          %vm495 = vcmask 24576
          %v496 = vsel %vm495, %v492, -inf
          %497 = vmax.xlane.f32.xlu0 %v496
          %v498 = vpop.xlane.xlu0 %497
          %v499 = vsub.f32 %v492, %v498
          %v500 = vmul.f32 %v499, 1.442695
          %v501 = vpow.pop %v500
          %v502 = vsel %vm495, %v501, 0.0
          %503 = vadd.xlane.f32.xlu0 %v502
          %v504 = vpop.xlane.xlu0 %503
          %v505 = vrcp.pop %v504
          %v506 = vmul.f32 %v501, %v505
          %507 = vst.msk [vmem:[%s201] sm:$0x1] %vm495, %v506
        $region44: #{tpu_custom_call.1} parent=31 // pred_fallthru
          _
        %s508 = sand.u32 %s110, 1
        %s509 = scalar_lea.sflag [#allocation5], %s508
        %s510 = sand.u32 %s110, 1
        %s511 = scalar_lea.vmem [#allocation6], %s510
        // Predicated region
        $region45: #{tpu_custom_call.1} parent=31 // pred_check
          %p512 = pneg %p120
        $region46: #{tpu_custom_call.1} parent=31 // pred_check_branch
          %514 = sbr.rel (%p512) target = $region48
        $region47: #{tpu_custom_call.1} parent=31 // pred_region
          %s516 = ssub.s32 16, 16
          %517 = vsyncadd %s509, %s516
          %s518 = smul.addr %s24, 16
          %s519 = scalar_lea.hbm %s3, %s518
          %s521 = sshll.u32 %s511, 4
          %s522 = int_to_ptr.vmem [resolvable:$true] %s521
          %524 = dma.vmem_to_hbm [thread:$0]  %s522, 16, %s519, %s509
        $region48: #{tpu_custom_call.1} parent=31 // pred_fallthru
          _
      $region32: #{tpu_custom_call.1} parent=5 // pred_fallthru
        _
      %p525 = scmp.le.s32.totalorder 2, %s15
      // Predicated region
      $region49: #{tpu_custom_call.1} parent=5 // pred_check
        %p526 = pneg %p525
      $region50: #{tpu_custom_call.1} parent=5 // pred_check_branch
        %528 = sbr.rel (%p526) target = $region52
      $region51: #{tpu_custom_call.1} parent=5 // pred_region
        %s529 = ssub.s32 %s15, 2
        // Predicated region
        $region53: #{tpu_custom_call.1} parent=51 // pred_check
          %p530 = pneg %p126
        $region54: #{tpu_custom_call.1} parent=51 // pred_check_branch
          %532 = sbr.rel (%p530) target = $region56
        $region55: #{tpu_custom_call.1} parent=51 // pred_region
          %s533 = sand.u32 %s111, 1
          %s534 = scalar_lea.sflag [#allocation5], %s533
          %s535 = sand.u32 %s111, 1
          %s536 = scalar_lea.vmem [#allocation6], %s535
          %537 = dma.done %s534, 16
        $region56: #{tpu_custom_call.1} parent=51 // pred_fallthru
          _
      $region52: #{tpu_custom_call.1} parent=5 // pred_fallthru
        _
    $region6: #{tpu_custom_call.1} parent=1 // loop_footer
      %s19 = sadd.s32 1, %s15
    $region7: #{tpu_custom_call.1} parent=1 // loop_footer_branch
      %14 = sbr.rel target = $region3
    $region8: #{tpu_custom_call.1} parent=1 // loop_exit
      _
    %538 = vsyncpa [#allocation4], 1
    %s539 = scalar_lea.sflag [#allocation4], 1
    %540 = vsyncpa %s539, 1
    %541 = vsyncpa [#allocation5], 1
    %s542 = scalar_lea.sflag [#allocation5], 1
    %543 = vsyncpa %s542, 1

</llo_original>
